<compile_context>
chip_gen: v5e
topology: v5e:2x2
jax: 0.10.0
libtpu: 0.0.40
codegen_flags: <defaults>
</compile_context>

<pallas_src>
import functools

import jax
import jax.numpy as jnp
from jax import lax
from jax.experimental import pallas as pl
from jax.experimental.pallas import tpu as pltpu


# ----------------------------------------------------------------------------
# Glue: deterministic replication of power_law_logit (host-side torch RNG in the
# original; replicated with jax.random so the script is self-contained).
# ----------------------------------------------------------------------------
def generate_exponent(num_experts, gini):
    exponent = 3
    if num_experts == 8:
        if gini == 0.2:
            exponent = 0.5
        elif gini == 0.4:
            exponent = 2
        elif gini == 0.6:
            exponent = 3  # (original code has a no-op `exponent == 3`; value stays 3)
        elif gini == 0.8:
            exponent = 4.5
    elif num_experts == 16:
        if gini == 0.1:
            exponent = 0.5
        elif gini == 0.2:
            exponent = 1.8
        elif gini == 0.3:
            exponent = 2.3
        elif gini == 0.4:
            exponent = 2.8
    elif num_experts == 64:
        if gini == 0.05:
            exponent = 1.4
        elif gini == 0.1:
            exponent = 2
        elif gini == 0.15:
            exponent = 2.4
        elif gini == 0.2:
            exponent = 4.5
    return exponent


def power_law_logits(key, dim, num_experts, gini):
    """Returns lane-dense bf16 logits of shape [num_experts, dim] (token axis last).

    bf16 storage is exact here because the logits are small non-negative Poisson
    integers (bf16 is integer-exact up to 256), so the downstream argmax is unchanged.
    """
    exponent = generate_exponent(num_experts, gini)
    ranks = jnp.arange(1, num_experts + 1, dtype=jnp.float32)
    w = ranks ** (-exponent)
    p = w / jnp.sum(w)
    k_rand, k_rows = jax.random.split(key)
    rand_matrix = jax.random.uniform(k_rand, (dim, num_experts), dtype=jnp.float32)
    row_keys = jax.random.split(k_rows, dim)

    def one_row(rk, rand_row):
        k_idx, k_pois = jax.random.split(rk)
        sampled = jax.random.categorical(k_idx, jnp.log(p), shape=(num_experts,))
        lam = rand_row[sampled]
        vals = jax.random.poisson(k_pois, lam).astype(jnp.float32)
        # TODO(synk): duplicate sampled indices overwrite in unspecified order
        # (torch uses "last write wins"); acceptable for synthetic logit generation.
        return jnp.zeros((num_experts,), jnp.float32).at[sampled].set(vals)

    # out_axes=1 -> [num_experts, dim]: token axis maps straight onto the 128-lane axis,
    # and the cast happens at the source (no separate transpose/cast HBM pass later).
    return jax.vmap(one_row, out_axes=1)(row_keys, rand_matrix).astype(jnp.bfloat16)


def _device_kind():
    try:
        return jax.devices()[0].device_kind.lower()
    except Exception:
        return ""


# ----------------------------------------------------------------------------
# Pallas kernel: first-occurrence argmax over the expert (sublane) axis of a
# lane-dense [E_pad, tile_tokens] logit tile; the one-hot is reduced over the
# token axis on the MXU (chunked dot with a ones matrix) into a (E_pad, 128)
# per-core resident accumulator block.
# ----------------------------------------------------------------------------
def gate_count_kernel(logits_ref, partial_ref, ones_ref, *, compute_dtype, dot_chunk):
    step = pl.program_id(1)

    @pl.when(step == 0)
    def _():
        partial_ref[...] = jnp.zeros_like(partial_ref)
        ones_ref[...] = jnp.ones(ones_ref.shape, ones_ref.dtype)

    x = logits_ref[...].astype(compute_dtype)          # [E_pad, tt]
    e_pad, tt = x.shape

    # First-occurrence argmax over the expert (sublane) axis == torch.argmax(softmax(x), 1):
    # softmax is monotone so it is dropped entirely (exact here; logits are small integers).
    xmax = jnp.max(x, axis=0, keepdims=True)                               # [1, tt]
    row = lax.broadcasted_iota(jnp.int32, (e_pad, tt), 0)
    first_max = jnp.min(jnp.where(x == xmax, row, e_pad), axis=0, keepdims=True)
    onehot = (row == first_max).astype(jnp.bfloat16)                       # [E_pad, tt]

    # Token-axis reduction on the otherwise-idle MXU: [E_pad, chunk] @ ones[chunk, 128]
    # -> f32 [E_pad, 128].  Every output lane holds the same per-chunk count (exact since
    # the operands are 0/1 bf16); the epilogue reads lane 0 only.
    ones_chunk = ones_ref[...]                                             # [dot_chunk, 128]
    acc = partial_ref[...]                                                 # [1, E_pad, 128]
    for c in range(tt // dot_chunk):
        acc += jnp.dot(onehot[:, c * dot_chunk:(c + 1) * dot_chunk], ones_chunk,
                       preferred_element_type=jnp.float32)[None, :, :]
    partial_ref[...] = acc


def gate_counts_pallas(logits_et, num_experts, *, tile_tokens=32768,
                       num_cores=None, compute_dtype=None):
    """Per-expert argmax counts of lane-dense bf16 `logits_et` ([E, T]) -> int32[E]."""
    e_in, num_tokens = logits_et.shape
    assert e_in == num_experts

    kind = _device_kind()
    is_v7 = ("v7" in kind) or ("tpu7" in kind.replace(" ", ""))
    is_v6 = "v6" in kind
    if num_cores is None:
        # 2-TensorCore split only pays off on v7x; on v5e/v6e it just adds a grid step.
        num_cores = 2 if is_v7 else 1
    if compute_dtype is None:
        # bf16 VALU exists on v6e/v7x; v5e (and unknown chips) stay on the f32 path.
        compute_dtype = jnp.bfloat16 if (is_v6 or is_v7) else jnp.float32

    # Pad experts to the bf16 native sublane tile (16); padded rows filled with -1e30 so
    # they never win the argmax.
    e_pad = -(-num_experts // 16) * 16

    # Token tiling: big tiles amortize the ~0.35us per-step pipeline overhead.  Keep the
    # MXU reduction chunk (ones RHS) small and a divisor of the tile.
    chunk = 2048
    per_core = -(-num_tokens // num_cores)
    if per_core <= chunk:
        tile_tokens = -(-per_core // 128) * 128
        dot_chunk = tile_tokens
    else:
        tile_tokens = min(-(-tile_tokens // chunk) * chunk, -(-per_core // chunk) * chunk)
        dot_chunk = chunk
    inner_steps = -(-per_core // tile_tokens)
    t_pad = num_cores * inner_steps * tile_tokens

    # Lane-dense bf16 logits are produced by the generator already; only pad the edges.
    # Padded token columns are all -1e30, so they deterministically first-occurrence-argmax
    # to expert row 0 and are subtracted from counts[0] below.
    lt = logits_et
    if e_pad != num_experts or t_pad != num_tokens:
        lt = jnp.pad(lt, ((0, e_pad - num_experts), (0, t_pad - num_tokens)),
                     constant_values=-1e30)

    kernel = functools.partial(gate_count_kernel,
                               compute_dtype=compute_dtype, dot_chunk=dot_chunk)

    partial = pl.pallas_call(
        kernel,
        out_shape=jax.ShapeDtypeStruct((num_cores, e_pad, 128), jnp.float32),
        grid=(num_cores, inner_steps),
        in_specs=[pl.BlockSpec((e_pad, tile_tokens),
                               lambda c, t: (0, c * inner_steps + t))],
        out_specs=pl.BlockSpec((1, e_pad, 128), lambda c, t: (c, 0, 0)),
        scratch_shapes=[pltpu.VMEM((dot_chunk, 128), jnp.bfloat16)],
        compiler_params=pltpu.CompilerParams(
            dimension_semantics=("parallel", "arbitrary"),
            # Raise v5e's 16 MiB scoped default; equals the v6e/v7x default (harmless there).
            vmem_limit_bytes=32 * 1024 * 1024),
    )(lt)

    # Every lane of the accumulator holds the identical count (exact f32 integers < 2^24).
    counts = jnp.sum(partial[:, :, 0], axis=0)[:num_experts].astype(jnp.int32)
    pad_tokens = t_pad - num_tokens
    if pad_tokens:
        counts = counts.at[0].add(-pad_tokens)   # all-padded columns argmax'd to expert 0
    return counts


# ----------------------------------------------------------------------------
# RandomGate forward
# ----------------------------------------------------------------------------
def random_gate_forward(x, *, num_experts, layer_id, gini, key):
    num_tokens = x.shape[0]
    assert num_tokens % num_experts == 0
    k_logits, k_perm = jax.random.split(key)
    # TODO(synk): logit generation (per-row categorical + poisson RNG) dominates end-to-end
    # time; generating inside the kernel via pltpu.prng_* would remove the HBM round trip but
    # would not reproduce the exact reference distribution, so it stays in plain JAX.
    logits_et = power_law_logits(k_logits, num_tokens, num_experts, gini)   # [E, T] bf16

    counts = gate_counts_pallas(logits_et, num_experts)                     # argmax counts

    # mask1 = mask1[:, idx] then sum over tokens  ==  counts[idx]
    idx = jax.random.permutation(k_perm, num_experts)
    expert_selection = counts[idx].astype(jnp.int32)
    return expert_selection


if __name__ == "__main__":
    num_tokens = 256
    model_dim = 32
    num_experts = 8
    layer_id = 0
    gini = 0.6

    key = jax.random.PRNGKey(0)
    k_x, k_gate = jax.random.split(key)
    # Input values are unused by the module (only shape[0] matters), matching PyTorch.
    x = jax.random.normal(k_x, (num_tokens, model_dim), dtype=jnp.float32)

    expert_selection = random_gate_forward(
        x, num_experts=num_experts, layer_id=layer_id, gini=gini, key=k_gate)
    expert_selection = jax.block_until_ready(expert_selection)

    # Pure-JAX reference (same RNG path as random_gate_forward).
    k_logits, k_perm = jax.random.split(k_gate)
    logits_et = power_law_logits(k_logits, num_tokens, num_experts, gini)
    logits_ref = logits_et.astype(jnp.float32).T                    # [T, E] f32
    ref_top = jnp.argmax(jax.nn.softmax(logits_ref, axis=1), axis=1)
    ref_counts = jnp.zeros((num_experts,), jnp.int32).at[ref_top].add(1)
    ref_sel = ref_counts[jax.random.permutation(k_perm, num_experts)]

    assert int(jnp.sum(expert_selection)) == num_tokens
    assert bool(jnp.array_equal(expert_selection, ref_sel))
    print("KERNEL_OK")
</pallas_src>

<mosaic_0001>
module attributes {stable_mosaic.version = 11 : i64} {
  func.func @gate_count_kernel(%arg0: i32, %arg1: i32, %arg2: memref<16x256xbf16, #tpu.memory_space<vmem>>, %arg3: memref<1x16x128xf32, #tpu.memory_space<vmem>>, %arg4: memref<256x128xbf16, #tpu.memory_space<vmem>>) attributes {dimension_semantics = [#tpu.dimension_semantics<parallel>, #tpu.dimension_semantics<arbitrary>], iteration_bounds = array<i64: 1, 1>, scalar_prefetch = 0 : i64, scratch_operands = 1 : i64, tpu.core_type = #tpu.core_type<tc>, window_params = [{transform_indices = @transform_0, window_bounds = array<i64: 16, 256>}, {transform_indices = @transform_1, window_bounds = array<i64: 1, 16, 128>}]} {
    %c0_i32 = arith.constant 0 : i32
    %0 = arith.cmpi eq, %arg1, %c0_i32 : i32
    %1 = arith.extui %0 : i1 to i32
    %c0_i32_0 = arith.constant 0 : i32
    %2 = arith.cmpi ne, %1, %c0_i32_0 : i32
    scf.if %2 {
      %cst_12 = arith.constant 0.000000e+00 : f32
      %25 = vector.broadcast %cst_12 : f32 to vector<1x16x128xf32>
      %c0_13 = arith.constant 0 : index
      %c0_14 = arith.constant 0 : index
      %c0_15 = arith.constant 0 : index
      %26 = vector.load %arg3[%c0_13, %c0_14, %c0_15] : memref<1x16x128xf32, #tpu.memory_space<vmem>>, vector<1x16x128xf32>
      tpu.vector_store %arg3[%c0_13, %c0_14, %c0_15], %25 {strides = array<i32>} : memref<1x16x128xf32, #tpu.memory_space<vmem>>, vector<1x16x128xf32>,
      %cst_16 = arith.constant 1.000000e+00 : bf16
      %27 = vector.broadcast %cst_16 : bf16 to vector<256x128xbf16>
      %c0_17 = arith.constant 0 : index
      %c0_18 = arith.constant 0 : index
      %28 = vector.load %arg4[%c0_17, %c0_18] : memref<256x128xbf16, #tpu.memory_space<vmem>>, vector<256x128xbf16>
      tpu.vector_store %arg4[%c0_17, %c0_18], %27 {strides = array<i32>} : memref<256x128xbf16, #tpu.memory_space<vmem>>, vector<256x128xbf16>,
    } else {
    }
    %c0 = arith.constant 0 : index
    %c0_1 = arith.constant 0 : index
    %3 = vector.load %arg2[%c0, %c0_1] : memref<16x256xbf16, #tpu.memory_space<vmem>>, vector<16x256xbf16>
    %4 = arith.extf %3 : vector<16x256xbf16> to vector<16x256xf32>
    %cst = arith.constant dense<0xFF800000> : vector<256xf32>
    %5 = vector.multi_reduction <maximumf>, %4, %cst [0] : vector<16x256xf32> to vector<256xf32>
    %6 = vector.shape_cast %5 : vector<256xf32> to vector<1x256xf32>
    %7 = tpu.iota {dimensions = array<i32: 0>} : vector<16x256xi32>
    %8 = vector.broadcast %6 : vector<1x256xf32> to vector<16x256xf32>
    %9 = arith.cmpf oeq, %4, %8 : vector<16x256xf32>
    %c16_i32 = arith.constant 16 : i32
    %10 = vector.broadcast %c16_i32 : i32 to vector<16x256xi32>
    %11 = arith.select %9, %7, %10 : vector<16x256xi1>, vector<16x256xi32>
    %cst_2 = arith.constant dense<2147483647> : vector<256xi32>
    %12 = vector.multi_reduction <minsi>, %11, %cst_2 [0] : vector<16x256xi32> to vector<256xi32>
    %13 = vector.shape_cast %12 : vector<256xi32> to vector<1x256xi32>
    %14 = vector.broadcast %13 : vector<1x256xi32> to vector<16x256xi32>
    %15 = arith.cmpi eq, %7, %14 : vector<16x256xi32>
    %16 = arith.extui %15 : vector<16x256xi1> to vector<16x256xi32>
    %17 = arith.sitofp %16 : vector<16x256xi32> to vector<16x256xf32>
    %18 = arith.truncf %17 : vector<16x256xf32> to vector<16x256xbf16>
    %c0_3 = arith.constant 0 : index
    %c0_4 = arith.constant 0 : index
    %19 = vector.load %arg4[%c0_3, %c0_4] : memref<256x128xbf16, #tpu.memory_space<vmem>>, vector<256x128xbf16>
    %c0_5 = arith.constant 0 : index
    %c0_6 = arith.constant 0 : index
    %c0_7 = arith.constant 0 : index
    %20 = vector.load %arg3[%c0_5, %c0_6, %c0_7] : memref<1x16x128xf32, #tpu.memory_space<vmem>>, vector<1x16x128xf32>
    %cst_8 = arith.constant dense<0.000000e+00> : vector<16x128xf32>
    %21 = tpu.matmul %18, %19, %cst_8 {dimension_numbers = #tpu.dot_dimension_numbers<[1], [0], [0], [1], [0, 0, 1, 1], [], []>} : vector<16x256xbf16>, vector<256x128xbf16>, vector<16x128xf32> -> vector<16x128xf32>
    %22 = vector.shape_cast %21 : vector<16x128xf32> to vector<1x16x128xf32>
    %23 = arith.addf %20, %22 : vector<1x16x128xf32>
    %c0_9 = arith.constant 0 : index
    %c0_10 = arith.constant 0 : index
    %c0_11 = arith.constant 0 : index
    %24 = vector.load %arg3[%c0_9, %c0_10, %c0_11] : memref<1x16x128xf32, #tpu.memory_space<vmem>>, vector<1x16x128xf32>
    tpu.vector_store %arg3[%c0_9, %c0_10, %c0_11], %23 {strides = array<i32>} : memref<1x16x128xf32, #tpu.memory_space<vmem>>, vector<1x16x128xf32>,
    return
  }
  func.func @transform_0(%arg0: i32, %arg1: i32) -> (i32, i32) {
    %c1_i32 = arith.constant 1 : i32
    %0 = arith.muli %arg0, %c1_i32 : i32
    %1 = arith.addi %0, %arg1 : i32
    %c0_i32 = arith.constant 0 : i32
    %c0_i32_0 = arith.constant 0 : i32
    return %c0_i32, %1 : i32, i32
  }
  func.func @transform_1(%arg0: i32, %arg1: i32) -> (i32, i32, i32) {
    %c0_i32 = arith.constant 0 : i32
    %c0_i32_0 = arith.constant 0 : i32
    %c0_i32_1 = arith.constant 0 : i32
    return %arg0, %c0_i32, %c0_i32_0 : i32, i32, i32
  }
}

</mosaic_0001>

<llo_original>
// kernel: tpu_custom_call.1
$region0: #{tpu_custom_call.1}
  #allocation0 [shape = 'u32[]', space=smem, size = 0x4, offset = 0x4, fixed_abs, tag = 'smem constant byte address 0x4 - core index']
  #allocation1 [shape = 'u32[72,128]{1,0:T(1,128)}', space=vmem, size = 0x9000, scoped, tag = 'internal scratch']
  #allocation2 [shape = 'bf16[256,128]{1,0:T(8,128)(2,1)}', space=vmem, size = 0x10000, scoped, tag = 'scratch operand']
  %s0 = inlined_call_operand.hbm [shape: bf16[16,256], index: 0, kind: input, shape index: {}]
  %s1 = inlined_call_operand.hbm [shape: f32[1,16,128], index: 1, kind: output, shape index: {}]
  %s2 = sld [smem:[#allocation0]]
  $region22: #{tpu_custom_call.1} parent=0
    _
  %s4 = ssub.s32 1, %s2
  %s5 = scalar_select 0, %s4, %s2
  $region1: #{tpu_custom_call.1} parent=0
    #allocation3 [shape = 'u8[8192]{0}', space=vmem, size = 0x2000, scoped, tag = 'input window, operand 0, single buffered']
    #allocation4 [shape = 's32[1]{0}', space=sflag, size = 0x4, scoped, tag = 'scoped memory for tpu_custom_call.1']
    #allocation5 [shape = 's32[1]{0}', space=sflag, size = 0x4, scoped, tag = 'scoped memory for tpu_custom_call.1']
    #allocation6 [shape = 'u8[8192]{0}', space=vmem, size = 0x2000, scoped, tag = 'output window, operand 0, single buffered']
    %6 = vsyncpa [#allocation4], 0
    %7 = vsyncpa [#allocation5], 0
    // Predicated region
    $region2: #{tpu_custom_call.1} parent=1 // pred_check
      _
    $region3: #{tpu_custom_call.1} parent=1 // pred_check_branch
      %9 = sbr.rel (0) target = $region5
    $region4: #{tpu_custom_call.1} parent=1 // pred_region
      %s10 = sadd.s32 0, 0
      %s11 = smul.u32 2, %s10
      %13 = vsyncadd [#allocation4], 0
      %s14 = smul.addr %s11, 4
      %s15 = scalar_lea.hbm %s0, %s14
      %s16 = sshll.u32 %s15, 4
      %s17 = int_to_ptr.hbm [resolvable:$true] %s16
      %s18 = sshll.u32 [#allocation3], 4
      %s19 = int_to_ptr.vmem [resolvable:$true] %s18
      %24 = dma.hbm_to_vmem [thread:$0]  %s17, 256, %s19, [#allocation4], 128, 128, 8
    $region5: #{tpu_custom_call.1} parent=1 // pred_fallthru
      _
    // Predicated region
    $region6: #{tpu_custom_call.1} parent=1 // pred_check
      _
    $region7: #{tpu_custom_call.1} parent=1 // pred_check_branch
      %26 = sbr.rel (0) target = $region9
    $region8: #{tpu_custom_call.1} parent=1 // pred_region
      %28 = dma.done [#allocation4], 256
    $region9: #{tpu_custom_call.1} parent=1 // pred_fallthru
      _
    %s29 = sadd.s32 0, 0
    %s30 = smul.u32 2, %s29
    %p32 = scmp.eq.s32.totalorder 0, 0
    // Predicated region
    $region10: #{tpu_custom_call.1} parent=1 // pred_check
      %p33 = pneg %p32
    $region11: #{tpu_custom_call.1} parent=1 // pred_check_branch
      %35 = sbr.rel (%p33) target = $region13
    $region12: #{tpu_custom_call.1} parent=1 // pred_region
      %36 = vst [vmem:[#allocation6] sm:$0xff] 0.0
      %37 = vst [vmem:[#allocation6 + $0x8] sm:$0xff] 0.0
      %38 = vst [vmem:[#allocation2] sm:$0xf] 1065369472
      %39 = vst [vmem:[#allocation2 + $0x4] sm:$0xf] 1065369472
      %40 = vst [vmem:[#allocation2 + $0x8] sm:$0xf] 1065369472
      %41 = vst [vmem:[#allocation2 + $0xc] sm:$0xf] 1065369472
      %42 = vst [vmem:[#allocation2 + $0x10] sm:$0xf] 1065369472
      %43 = vst [vmem:[#allocation2 + $0x14] sm:$0xf] 1065369472
      %44 = vst [vmem:[#allocation2 + $0x18] sm:$0xf] 1065369472
      %45 = vst [vmem:[#allocation2 + $0x1c] sm:$0xf] 1065369472
      %46 = vst [vmem:[#allocation2 + $0x20] sm:$0xf] 1065369472
      %47 = vst [vmem:[#allocation2 + $0x24] sm:$0xf] 1065369472
      %48 = vst [vmem:[#allocation2 + $0x28] sm:$0xf] 1065369472
      %49 = vst [vmem:[#allocation2 + $0x2c] sm:$0xf] 1065369472
      %50 = vst [vmem:[#allocation2 + $0x30] sm:$0xf] 1065369472
      %51 = vst [vmem:[#allocation2 + $0x34] sm:$0xf] 1065369472
      %52 = vst [vmem:[#allocation2 + $0x38] sm:$0xf] 1065369472
      %53 = vst [vmem:[#allocation2 + $0x3c] sm:$0xf] 1065369472
      %54 = vst [vmem:[#allocation2 + $0x40] sm:$0xf] 1065369472
      %55 = vst [vmem:[#allocation2 + $0x44] sm:$0xf] 1065369472
      %56 = vst [vmem:[#allocation2 + $0x48] sm:$0xf] 1065369472
      %57 = vst [vmem:[#allocation2 + $0x4c] sm:$0xf] 1065369472
      %58 = vst [vmem:[#allocation2 + $0x50] sm:$0xf] 1065369472
      %59 = vst [vmem:[#allocation2 + $0x54] sm:$0xf] 1065369472
      %60 = vst [vmem:[#allocation2 + $0x58] sm:$0xf] 1065369472
      %61 = vst [vmem:[#allocation2 + $0x5c] sm:$0xf] 1065369472
      %62 = vst [vmem:[#allocation2 + $0x60] sm:$0xf] 1065369472
      %63 = vst [vmem:[#allocation2 + $0x64] sm:$0xf] 1065369472
      %64 = vst [vmem:[#allocation2 + $0x68] sm:$0xf] 1065369472
      %65 = vst [vmem:[#allocation2 + $0x6c] sm:$0xf] 1065369472
      %66 = vst [vmem:[#allocation2 + $0x70] sm:$0xf] 1065369472
      %67 = vst [vmem:[#allocation2 + $0x74] sm:$0xf] 1065369472
      %68 = vst [vmem:[#allocation2 + $0x78] sm:$0xf] 1065369472
      %69 = vst [vmem:[#allocation2 + $0x7c] sm:$0xf] 1065369472
    $region13: #{tpu_custom_call.1} parent=1 // pred_fallthru
      _
    %v70 = vld [vmem:[#allocation3] sm:$0xff]
    %v71 = vld [vmem:[#allocation3 + $0x8] sm:$0xff]
    %v72 = vunpack.c.l.bf16 %v70
    %v73 = vunpack.c.h.bf16 %v70
    %v74 = vunpack.c.l.bf16 %v71
    %v75 = vunpack.c.h.bf16 %v71
    %v76 = vmax.f32 %v72, %v74
    %v77 = vrot.slane %v76, 4
    %v78 = vmax.f32 %v76, %v77
    %v79 = vrot.slane %v78, 2
    %v80 = vmax.f32 %v78, %v79
    %v81 = vrot.slane %v80, 1
    %v82 = vmax.f32 %v80, %v81
    %v83 = vmax.f32 %v73, %v75
    %v84 = vrot.slane %v83, 4
    %v85 = vmax.f32 %v83, %v84
    %v86 = vrot.slane %v85, 2
    %v87 = vmax.f32 %v85, %v86
    %v88 = vrot.slane %v87, 1
    %v89 = vmax.f32 %v87, %v88
    %v90 = vlaneseq
    %v91 = vshrl.u32 %v90, 7
    %v92 = vadd.s32 %v91, 8
    %vm93 = vcmp.eq.f32.partialorder %v72, %v82
    %vm94 = vcmp.eq.f32.partialorder %v73, %v89
    %vm95 = vcmp.eq.f32.partialorder %v74, %v82
    %vm96 = vcmp.eq.f32.partialorder %v75, %v89
    %v97 = vsel %vm93, %v91, 16
    %v98 = vsel %vm94, %v91, 16
    %v99 = vsel %vm95, %v92, 16
    %v100 = vsel %vm96, %v92, 16
    %vm101 = vcmp.lt.s32.totalorder %v97, %v99
    %v102 = vsel %vm101, %v97, %v99
    %v103 = vrot.slane %v102, 4
    %vm104 = vcmp.lt.s32.totalorder %v102, %v103
    %v105 = vsel %vm104, %v102, %v103
    %v106 = vrot.slane %v105, 2
    %vm107 = vcmp.lt.s32.totalorder %v105, %v106
    %v108 = vsel %vm107, %v105, %v106
    %v109 = vrot.slane %v108, 1
    %vm110 = vcmp.lt.s32.totalorder %v108, %v109
    %v111 = vsel %vm110, %v108, %v109
    %vm112 = vcmp.lt.s32.totalorder %v98, %v100
    %v113 = vsel %vm112, %v98, %v100
    %v114 = vrot.slane %v113, 4
    %vm115 = vcmp.lt.s32.totalorder %v113, %v114
    %v116 = vsel %vm115, %v113, %v114
    %v117 = vrot.slane %v116, 2
    %vm118 = vcmp.lt.s32.totalorder %v116, %v117
    %v119 = vsel %vm118, %v116, %v117
    %v120 = vrot.slane %v119, 1
    %vm121 = vcmp.lt.s32.totalorder %v119, %v120
    %v122 = vsel %vm121, %v119, %v120
    %vm123 = vcmp.eq.s32.totalorder %v91, %v111
    %vm124 = vcmp.eq.s32.totalorder %v91, %v122
    %vm125 = vcmp.eq.s32.totalorder %v92, %v111
    %vm126 = vcmp.eq.s32.totalorder %v92, %v122
    %v127 = vsel %vm123, 1, 0
    %v128 = vsel %vm124, 1, 0
    %v129 = vsel %vm125, 1, 0
    %v130 = vsel %vm126, 1, 0
    %v131 = vcvt.s32.f32 %v127
    %v132 = vcvt.s32.f32 %v128
    %v133 = vcvt.s32.f32 %v129
    %v134 = vcvt.s32.f32 %v130
    %v135 = vpack.c.bf16 %v133, %v131
    %v136 = vpack.c.bf16 %v134, %v132
    %v137 = vld [vmem:[#allocation2] sm:$0xf]
    %v138 = vld [vmem:[#allocation2 + $0x4] sm:$0xf]
    %v139 = vld [vmem:[#allocation2 + $0x8] sm:$0xf]
    %v140 = vld [vmem:[#allocation2 + $0xc] sm:$0xf]
    %v141 = vld [vmem:[#allocation2 + $0x10] sm:$0xf]
    %v142 = vld [vmem:[#allocation2 + $0x14] sm:$0xf]
    %v143 = vld [vmem:[#allocation2 + $0x18] sm:$0xf]
    %v144 = vld [vmem:[#allocation2 + $0x1c] sm:$0xf]
    %v145 = vld [vmem:[#allocation2 + $0x20] sm:$0xf]
    %v146 = vld [vmem:[#allocation2 + $0x24] sm:$0xf]
    %v147 = vld [vmem:[#allocation2 + $0x28] sm:$0xf]
    %v148 = vld [vmem:[#allocation2 + $0x2c] sm:$0xf]
    %v149 = vld [vmem:[#allocation2 + $0x30] sm:$0xf]
    %v150 = vld [vmem:[#allocation2 + $0x34] sm:$0xf]
    %v151 = vld [vmem:[#allocation2 + $0x38] sm:$0xf]
    %v152 = vld [vmem:[#allocation2 + $0x3c] sm:$0xf]
    %v153 = vld [vmem:[#allocation2 + $0x40] sm:$0xf]
    %v154 = vld [vmem:[#allocation2 + $0x44] sm:$0xf]
    %v155 = vld [vmem:[#allocation2 + $0x48] sm:$0xf]
    %v156 = vld [vmem:[#allocation2 + $0x4c] sm:$0xf]
    %v157 = vld [vmem:[#allocation2 + $0x50] sm:$0xf]
    %v158 = vld [vmem:[#allocation2 + $0x54] sm:$0xf]
    %v159 = vld [vmem:[#allocation2 + $0x58] sm:$0xf]
    %v160 = vld [vmem:[#allocation2 + $0x5c] sm:$0xf]
    %v161 = vld [vmem:[#allocation2 + $0x60] sm:$0xf]
    %v162 = vld [vmem:[#allocation2 + $0x64] sm:$0xf]
    %v163 = vld [vmem:[#allocation2 + $0x68] sm:$0xf]
    %v164 = vld [vmem:[#allocation2 + $0x6c] sm:$0xf]
    %v165 = vld [vmem:[#allocation2 + $0x70] sm:$0xf]
    %v166 = vld [vmem:[#allocation2 + $0x74] sm:$0xf]
    %v167 = vld [vmem:[#allocation2 + $0x78] sm:$0xf]
    %v168 = vld [vmem:[#allocation2 + $0x7c] sm:$0xf]
    %v169 = vld [vmem:[#allocation6] sm:$0xff]
    %v170 = vld [vmem:[#allocation6 + $0x8] sm:$0xff]
    %v203 = vunpack.c.l.b16 %v137
    %v204 = vunpack.c.l.b16 %v138
    %v205 = vunpack.c.l.b16 %v139
    %v206 = vunpack.c.l.b16 %v140
    %v207 = vunpack.c.l.b16 %v141
    %v208 = vunpack.c.l.b16 %v142
    %v209 = vunpack.c.l.b16 %v143
    %v210 = vunpack.c.l.b16 %v144
    %v211 = vunpack.c.l.b16 %v145
    %v212 = vunpack.c.l.b16 %v146
    %v213 = vunpack.c.l.b16 %v147
    %v214 = vunpack.c.l.b16 %v148
    %v215 = vunpack.c.l.b16 %v149
    %v216 = vunpack.c.l.b16 %v150
    %v217 = vunpack.c.l.b16 %v151
    %v218 = vunpack.c.l.b16 %v152
    %v219 = vunpack.c.l.b16 %v153
    %v220 = vunpack.c.l.b16 %v154
    %v221 = vunpack.c.l.b16 %v155
    %v222 = vunpack.c.l.b16 %v156
    %v223 = vunpack.c.l.b16 %v157
    %v224 = vunpack.c.l.b16 %v158
    %v225 = vunpack.c.l.b16 %v159
    %v226 = vunpack.c.l.b16 %v160
    %v227 = vunpack.c.l.b16 %v161
    %v228 = vunpack.c.l.b16 %v162
    %v229 = vunpack.c.l.b16 %v163
    %v230 = vunpack.c.l.b16 %v164
    %v231 = vunpack.c.l.b16 %v165
    %v232 = vunpack.c.l.b16 %v166
    %v233 = vunpack.c.l.b16 %v167
    %v234 = vunpack.c.l.b16 %v168
    %v235 = vpack.c.b16 %v204, %v203
    %v236 = vpack.c.b16 %v206, %v205
    %v237 = vpack.c.b16 %v208, %v207
    %v238 = vpack.c.b16 %v210, %v209
    %v239 = vpack.c.b16 %v212, %v211
    %v240 = vpack.c.b16 %v214, %v213
    %v241 = vpack.c.b16 %v216, %v215
    %v242 = vpack.c.b16 %v218, %v217
    %v243 = vpack.c.b16 %v220, %v219
    %v244 = vpack.c.b16 %v222, %v221
    %v245 = vpack.c.b16 %v224, %v223
    %v246 = vpack.c.b16 %v226, %v225
    %v247 = vpack.c.b16 %v228, %v227
    %v248 = vpack.c.b16 %v230, %v229
    %v249 = vpack.c.b16 %v232, %v231
    %v250 = vpack.c.b16 %v234, %v233
    %267 = vmatpush.bf16.msra.mxu0 %v242
    %268 = vmatpush.bf16.msra.mxu0 %v241
    %269 = vmatpush.bf16.msra.mxu0 %v240
    %270 = vmatpush.bf16.msra.mxu0 %v239
    %271 = vmatpush.bf16.msra.mxu0 %v238
    %272 = vmatpush.bf16.msra.mxu0 %v237
    %273 = vmatpush.bf16.msra.mxu0 %v236
    %274 = vmatpush.bf16.msra.mxu0 %v235
    %275 = vmatmul.bf16.gmra.mxu0 %v135
    %v276 = vpop.f32.mrf.mxu0
    %v277 = vadd.f32 0.0, %v276
    %v278 = vpop.f32.mrf.mxu0
    %v279 = vadd.f32 0.0, %v278
    %280 = vdwg.mxu0
    %281 = vmatpush.bf16.msra.mxu0 %v250
    %282 = vmatpush.bf16.msra.mxu0 %v249
    %283 = vmatpush.bf16.msra.mxu0 %v248
    %284 = vmatpush.bf16.msra.mxu0 %v247
    %285 = vmatpush.bf16.msra.mxu0 %v246
    %286 = vmatpush.bf16.msra.mxu0 %v245
    %287 = vmatpush.bf16.msra.mxu0 %v244
    %288 = vmatpush.bf16.msra.mxu0 %v243
    %289 = vmatmul.bf16.gmra.mxu0 %v136
    %v290 = vpop.f32.mrf.mxu0
    %v291 = vadd.f32 %v277, %v290
    %v292 = vpop.f32.mrf.mxu0
    %v293 = vadd.f32 %v279, %v292
    %294 = vdwg.mxu0
    %v295 = vadd.f32 %v169, %v291
    %v296 = vadd.f32 %v170, %v293
    %297 = vst [vmem:[#allocation6] sm:$0xff] %v295
    %298 = vst [vmem:[#allocation6 + $0x8] sm:$0xff] %v296
    // Predicated region
    $region14: #{tpu_custom_call.1} parent=1 // pred_check
      _
    $region15: #{tpu_custom_call.1} parent=1 // pred_check_branch
      %300 = sbr.rel (0) target = $region17
    $region16: #{tpu_custom_call.1} parent=1 // pred_region
      %302 = vsyncadd [#allocation5], 0
      %s303 = sshll.u32 [#allocation6], 4
      %s304 = int_to_ptr.vmem [resolvable:$true] %s303
      %s305 = sshll.u32 %s1, 4
      %s306 = int_to_ptr.hbm [resolvable:$true] %s305
      %311 = dma.vmem_to_hbm [thread:$0]  %s304, 256, %s306, [#allocation5], 128, 128, 8
    $region17: #{tpu_custom_call.1} parent=1 // pred_fallthru
      _
    // Predicated region
    $region18: #{tpu_custom_call.1} parent=1 // pred_check
      _
    $region19: #{tpu_custom_call.1} parent=1 // pred_check_branch
      %313 = sbr.rel (0) target = $region21
    $region20: #{tpu_custom_call.1} parent=1 // pred_region
      %315 = dma.done [#allocation5], 256
    $region21: #{tpu_custom_call.1} parent=1 // pred_fallthru
      _
    %316 = vsyncpa [#allocation4], 1
    %317 = vsyncpa [#allocation5], 1

</llo_original>
